<compile_context>
chip_gen: v7x
topology: tpu7x:2x2x1
jax: 0.10.0
libtpu: 0.0.40
codegen_flags: <defaults>
</compile_context>

<pallas_src>
import math

import jax
import jax.numpy as jnp
from jax.experimental import pallas as pl
from jax.experimental.pallas import tpu as pltpu

EPS = 1e-6
_MIB = 1024 * 1024


def _residual_ln_kernel(x_ref, tx_ref, gb_ref, o_ref):
    # x_ref, tx_ref, o_ref: (TILE_ROWS, F); gb_ref: (2, F) f32 (gamma, beta).
    tx = tx_ref[...].astype(jnp.float32)
    mean = jnp.mean(tx, axis=-1, keepdims=True)
    centered = tx - mean
    var = jnp.mean(centered * centered, axis=-1, keepdims=True)
    inv = jax.lax.rsqrt(var + EPS)          # (TILE_ROWS, 1)
    gamma = gb_ref[0:1, :]                  # (1, F)
    beta = gb_ref[1:2, :]                   # (1, F)
    # TODO(synk): dropout is identity at inference; training-mode dropout would
    # use pltpu.prng_seed + pltpu.stateful_bernoulli with the module's p.
    out = x_ref[...].astype(jnp.float32) + (centered * inv) * gamma + beta
    o_ref[...] = out.astype(o_ref.dtype)


def _round_up(n, m):
    return ((n + m - 1) // m) * m


def _vmem_plan():
    """Generation-aware (tiling budget, compiler limit) in bytes.

    128 MiB VMEM chips (v5e/v6e): budget 64 MiB, limit 96 MiB.
    64 MiB VMEM chips (v7x):      budget ~37 MiB, limit 56 MiB.
    """
    cap = 64 * _MIB  # conservative fallback if the query fails
    try:
        info = pltpu.get_tpu_info()
        cap = int(getattr(info, "vmem_capacity_bytes", cap) or cap)
    except Exception:
        pass
    limit = min(96 * _MIB, cap * 7 // 8)
    budget = limit * 2 // 3
    return budget, limit


def residual_connection(
    x,
    transformed_x,
    gamma,
    beta,
    *,
    max_tile_rows=1024,
    vmem_budget_bytes=None,
    vmem_limit_bytes=None,
):
    """x, transformed_x: (..., F); gamma, beta: (F,). Returns x.shape."""
    assert x.shape == transformed_x.shape, "x and transformed_x must match"
    *lead, F = x.shape
    rows = math.prod(lead) if lead else 1
    assert gamma.shape[-1] == F and beta.shape[-1] == F

    auto_budget, auto_limit = _vmem_plan()
    if vmem_budget_bytes is None:
        vmem_budget_bytes = auto_budget
    if vmem_limit_bytes is None:
        # Keep the compiler's scoped-VMEM limit comfortably above the budget.
        vmem_limit_bytes = max(auto_limit, vmem_budget_bytes * 3 // 2)

    itemsize_x = jnp.dtype(x.dtype).itemsize
    itemsize_tx = jnp.dtype(transformed_x.dtype).itemsize
    # Sublane packing: 8 rows/vreg group for 4-byte, 16 for 2-byte, 32 for 1-byte.
    sublane = max(8, 32 // min(itemsize_x, itemsize_tx))

    # Per-row VMEM footprint: 3 streamed arrays (x, tx, out) x 2 pipeline
    # buffers at their I/O dtypes + f32 full-tile temporaries in the body
    # (one fewer when the input is already f32: the .astype is a no-op).
    f32_temps = 2 if transformed_x.dtype == jnp.float32 else 3
    bytes_per_row = F * (2 * (2 * itemsize_x + itemsize_tx) + f32_temps * 4)
    fit_rows = max(sublane, (vmem_budget_bytes // bytes_per_row) // sublane * sublane)

    # Guarantee >= 2 grid steps so dimension_semantics=("parallel",) shards the
    # row grid across both TensorCores on v7x (negligible cost on 1-TC chips).
    two_step_cap = _round_up(pl.cdiv(rows, 2), sublane)
    cap_rows = max(sublane, max_tile_rows // sublane * sublane)
    tile_rows = min(cap_rows, fit_rows, two_step_cap)
    if rows < tile_rows:
        tile_rows = rows  # block == full array extent (allowed for any count)

    num_tiles = pl.cdiv(rows, tile_rows)

    x2 = x.reshape(rows, F)
    tx2 = transformed_x.reshape(rows, F)
    gb = jnp.stack(
        [gamma.reshape(F), beta.reshape(F)]
    ).astype(jnp.float32)  # (2, F): one operand instead of two

    # Ragged row counts: rely on Pallas' padded-last-block semantics — LN is
    # per-row, so garbage tail rows are independent and their writes are
    # dropped. No wrapper-side jnp.pad (which would cost a full extra HBM
    # read+write of both inputs on a bandwidth-bound kernel).
    # NOTE: if the model's F is not a multiple of 128, output stores become
    # masked partial stores; keep F lane-aligned at the model level if possible.
    out2 = pl.pallas_call(
        _residual_ln_kernel,
        out_shape=jax.ShapeDtypeStruct((rows, F), x.dtype),
        grid_spec=pltpu.PrefetchScalarGridSpec(
            num_scalar_prefetch=0,
            grid=(num_tiles,),
            in_specs=[
                pl.BlockSpec((tile_rows, F), lambda i: (i, 0)),
                pl.BlockSpec((tile_rows, F), lambda i: (i, 0)),
                pl.BlockSpec((2, F), lambda i: (0, 0)),
            ],
            out_specs=pl.BlockSpec((tile_rows, F), lambda i: (i, 0)),
        ),
        compiler_params=pltpu.CompilerParams(
            dimension_semantics=("parallel",),
            vmem_limit_bytes=int(vmem_limit_bytes),
        ),
    )(x2, tx2, gb)

    return out2.reshape(x.shape)


def _reference(x, transformed_x, gamma, beta):
    tx = transformed_x.astype(jnp.float32)
    mean = jnp.mean(tx, axis=-1, keepdims=True)
    var = jnp.mean((tx - mean) ** 2, axis=-1, keepdims=True)
    ln = (tx - mean) / jnp.sqrt(var + EPS) * gamma.astype(jnp.float32) + beta.astype(
        jnp.float32
    )
    return (x.astype(jnp.float32) + ln).astype(x.dtype)


if __name__ == "__main__":
    key = jax.random.PRNGKey(0)

    # Case 1: small, lane-aligned f32 shape (F = 128); rows=16 -> 2 grid steps.
    B, S, F = 2, 8, 128
    kx, kt, kg, kb, key = jax.random.split(key, 5)
    x = jax.random.normal(kx, (B, S, F), dtype=jnp.float32)
    tx = jax.random.normal(kt, (B, S, F), dtype=jnp.float32)
    gamma = 1.0 + 0.1 * jax.random.normal(kg, (F,), dtype=jnp.float32)
    beta = 0.1 * jax.random.normal(kb, (F,), dtype=jnp.float32)

    out = jax.block_until_ready(residual_connection(x, tx, gamma, beta))
    ref = _reference(x, tx, gamma, beta)
    assert out.shape == (B, S, F)
    assert jnp.allclose(out, ref, atol=1e-5, rtol=1e-5), "mismatch vs reference (case 1)"

    # Case 2: ragged row count (111 rows), partial last block, no wrapper pad.
    B2, S2, F2 = 3, 37, 256
    kx2, kt2, key = jax.random.split(key, 3)
    x2 = jax.random.normal(kx2, (B2, S2, F2), dtype=jnp.float32)
    tx2 = jax.random.normal(kt2, (B2, S2, F2), dtype=jnp.float32)
    gamma2 = jnp.ones((F2,), dtype=jnp.float32)
    beta2 = jnp.zeros((F2,), dtype=jnp.float32)

    out2 = jax.block_until_ready(
        residual_connection(x2, tx2, gamma2, beta2, max_tile_rows=64)
    )
    ref2 = _reference(x2, tx2, gamma2, beta2)
    assert out2.shape == (B2, S2, F2)
    assert jnp.allclose(out2, ref2, atol=1e-5, rtol=1e-5), "mismatch vs reference (case 2)"

    # Case 3: bf16 inputs — exercises 16-row sublane granularity + partial block.
    B3, S3, F3 = 2, 24, 128
    kx3, kt3, key = jax.random.split(key, 3)
    x3 = jax.random.normal(kx3, (B3, S3, F3), dtype=jnp.float32).astype(jnp.bfloat16)
    tx3 = jax.random.normal(kt3, (B3, S3, F3), dtype=jnp.float32).astype(jnp.bfloat16)
    gamma3 = jnp.ones((F3,), dtype=jnp.float32)
    beta3 = jnp.zeros((F3,), dtype=jnp.float32)

    out3 = jax.block_until_ready(residual_connection(x3, tx3, gamma3, beta3))
    ref3 = _reference(x3, tx3, gamma3, beta3)
    assert out3.shape == (B3, S3, F3)
    assert jnp.allclose(
        out3.astype(jnp.float32), ref3.astype(jnp.float32), atol=5e-2, rtol=5e-2
    ), "mismatch vs reference (case 3)"

    print("KERNEL_OK")
</pallas_src>

<mosaic_0001>
module attributes {stable_mosaic.version = 11 : i64} {
  func.func @_residual_ln_kernel(%arg0: i32, %arg1: memref<8x128xf32, #tpu.memory_space<vmem>>, %arg2: memref<8x128xf32, #tpu.memory_space<vmem>>, %arg3: memref<2x128xf32, #tpu.memory_space<vmem>>, %arg4: memref<8x128xf32, #tpu.memory_space<vmem>>) attributes {dimension_semantics = [#tpu.dimension_semantics<parallel>], iteration_bounds = array<i64: 2>, scalar_prefetch = 0 : i64, scratch_operands = 0 : i64, tpu.core_type = #tpu.core_type<tc>, window_params = [{transform_indices = @transform_0, window_bounds = array<i64: 8, 128>}, {transform_indices = @transform_1, window_bounds = array<i64: 8, 128>}, {pipeline_mode = #tpu.pipeline_mode<synchronous>, transform_indices = @transform_2, window_bounds = array<i64: 2, 128>}, {transform_indices = @transform_3, window_bounds = array<i64: 8, 128>}]} {
    %c0 = arith.constant 0 : index
    %c0_0 = arith.constant 0 : index
    %0 = vector.load %arg2[%c0, %c0_0] : memref<8x128xf32, #tpu.memory_space<vmem>>, vector<8x128xf32>
    %cst = arith.constant dense<0.000000e+00> : vector<8xf32>
    %1 = vector.multi_reduction <add>, %0, %cst [1] : vector<8x128xf32> to vector<8xf32>
    %2 = vector.shape_cast %1 : vector<8xf32> to vector<8x1xf32>
    %cst_1 = arith.constant 1.280000e+02 : f32
    %3 = vector.broadcast %cst_1 : f32 to vector<8x1xf32>
    %4 = arith.divf %2, %3 : vector<8x1xf32>
    %5 = vector.broadcast %4 : vector<8x1xf32> to vector<8x128xf32>
    %6 = arith.subf %0, %5 : vector<8x128xf32>
    %7 = arith.mulf %6, %6 : vector<8x128xf32>
    %cst_2 = arith.constant dense<0.000000e+00> : vector<8xf32>
    %8 = vector.multi_reduction <add>, %7, %cst_2 [1] : vector<8x128xf32> to vector<8xf32>
    %9 = vector.shape_cast %8 : vector<8xf32> to vector<8x1xf32>
    %cst_3 = arith.constant 1.280000e+02 : f32
    %10 = vector.broadcast %cst_3 : f32 to vector<8x1xf32>
    %11 = arith.divf %9, %10 : vector<8x1xf32>
    %cst_4 = arith.constant 9.99999997E-7 : f32
    %12 = vector.broadcast %cst_4 : f32 to vector<8x1xf32>
    %13 = arith.addf %11, %12 : vector<8x1xf32>
    %14 = math.rsqrt %13 : vector<8x1xf32>
    %c0_5 = arith.constant 0 : index
    %c0_6 = arith.constant 0 : index
    %15 = vector.load %arg3[%c0_5, %c0_6] : memref<2x128xf32, #tpu.memory_space<vmem>>, vector<1x128xf32>
    %c1 = arith.constant 1 : index
    %c0_7 = arith.constant 0 : index
    %16 = vector.load %arg3[%c1, %c0_7] : memref<2x128xf32, #tpu.memory_space<vmem>>, vector<1x128xf32>
    %c0_8 = arith.constant 0 : index
    %c0_9 = arith.constant 0 : index
    %17 = vector.load %arg1[%c0_8, %c0_9] : memref<8x128xf32, #tpu.memory_space<vmem>>, vector<8x128xf32>
    %18 = vector.broadcast %14 : vector<8x1xf32> to vector<8x128xf32>
    %19 = arith.mulf %6, %18 : vector<8x128xf32>
    %20 = vector.broadcast %15 : vector<1x128xf32> to vector<8x128xf32>
    %21 = arith.mulf %19, %20 : vector<8x128xf32>
    %22 = arith.addf %17, %21 : vector<8x128xf32>
    %23 = vector.broadcast %16 : vector<1x128xf32> to vector<8x128xf32>
    %24 = arith.addf %22, %23 : vector<8x128xf32>
    %c0_10 = arith.constant 0 : index
    %c0_11 = arith.constant 0 : index
    %25 = vector.load %arg4[%c0_10, %c0_11] : memref<8x128xf32, #tpu.memory_space<vmem>>, vector<8x128xf32>
    tpu.vector_store %arg4[%c0_10, %c0_11], %24 {strides = array<i32>} : memref<8x128xf32, #tpu.memory_space<vmem>>, vector<8x128xf32>,
    return
  }
  func.func @transform_0(%arg0: i32) -> (i32, i32) {
    %c0_i32 = arith.constant 0 : i32
    %c0_i32_0 = arith.constant 0 : i32
    return %arg0, %c0_i32 : i32, i32
  }
  func.func @transform_1(%arg0: i32) -> (i32, i32) {
    %c0_i32 = arith.constant 0 : i32
    %c0_i32_0 = arith.constant 0 : i32
    return %arg0, %c0_i32 : i32, i32
  }
  func.func @transform_2(%arg0: i32) -> (i32, i32) {
    %c0_i32 = arith.constant 0 : i32
    %c0_i32_0 = arith.constant 0 : i32
    %c0_i32_1 = arith.constant 0 : i32
    return %c0_i32, %c0_i32_0 : i32, i32
  }
  func.func @transform_3(%arg0: i32) -> (i32, i32) {
    %c0_i32 = arith.constant 0 : i32
    %c0_i32_0 = arith.constant 0 : i32
    return %arg0, %c0_i32 : i32, i32
  }
}

</mosaic_0001>

<llo_original>
// kernel: tpu_custom_call.1
$region0: #{tpu_custom_call.1}
  #allocation0 [shape = 'u32[]', space=smem, size = 0x4, offset = 0x4, fixed_abs, tag = 'smem constant byte address 0x4 - core index']
  #allocation1 [shape = 'u32[144,128]{1,0:T(1,128)}', space=vmem, size = 0x12000, scoped, tag = 'internal scratch']
  %s0 = inlined_call_operand.hbm [shape: f32[16,128], index: 0, kind: input, shape index: {}]
  %s1 = inlined_call_operand.hbm [shape: f32[16,128], index: 1, kind: input, shape index: {}]
  %s2 = inlined_call_operand.vmem [shape: f32[2,128], index: 2, kind: input, shape index: {}]
  %s3 = inlined_call_operand.hbm [shape: f32[16,128], index: 3, kind: output, shape index: {}]
  %s4 = sld [smem:[#allocation0]]
  $region53: #{tpu_custom_call.1} parent=0
    _
  %s6 = ssub.s32 1, %s4
  %s7 = scalar_select 0, %s6, %s4
  $region1: #{tpu_custom_call.1} parent=0
    #allocation2 [shape = 'u8[8192]{0}', space=vmem, size = 0x2000, scoped, tag = 'input window, operand 0']
    #allocation3 [shape = 's32[2]{0}', space=sflag, size = 0x8, scoped, tag = 'scoped memory for tpu_custom_call.1']
    #allocation4 [shape = 's32[2]{0}', space=sflag, size = 0x8, scoped, tag = 'scoped memory for tpu_custom_call.1']
    #allocation5 [shape = 'u8[8192]{0}', space=vmem, size = 0x2000, scoped, tag = 'input window, operand 1']
    #allocation6 [shape = 's32[2]{0}', space=sflag, size = 0x8, scoped, tag = 'scoped memory for tpu_custom_call.1']
    #allocation7 [shape = 'u8[8192]{0}', space=vmem, size = 0x2000, scoped, tag = 'output window, operand 0']
    %8 = vsyncpa [#allocation3], 0
    %s9 = scalar_lea.sflag [#allocation3], 1
    %10 = vsyncpa %s9, 0
    %11 = vsyncpa [#allocation6], 0
    %s12 = scalar_lea.sflag [#allocation6], 1
    %13 = vsyncpa %s12, 0
    %14 = vsyncpa [#allocation4], 0
    %s15 = scalar_lea.sflag [#allocation4], 1
    %16 = vsyncpa %s15, 0
    loop: start=0, step=1, limit=4
    $region2: #{tpu_custom_call.1} parent=1 // loop_pre_header
      _
    $region3: #{tpu_custom_call.1} parent=1 // loop_header
      %s18 = sphi 0, %s22
      %p19 = scmp.ge.s32.totalorder %s18, 4
      %s28 = sphi 0, %s30
      %s31 = sphi 0, %s28
      %s32 = sphi 0, %s31
      %s48 = sphi 0, %s32
      %s54 = sphi 0, %s56
      %s57 = sphi 0, %s54
      %s58 = sphi 0, %s57
      %s74 = sphi 0, %s58
      %s78 = sphi 0, %s78
      %s80 = sphi 0, %s78
      %s81 = sphi 0, %s80
      %s95 = sphi 0, %s81
      %s101 = sphi 0, %s103
      %s104 = sphi 0, %s101
      %s105 = sphi 0, %s104
      %s121 = sphi 0, %s105
    $region4: #{tpu_custom_call.1} parent=1 // loop_header_branch
      %21 = sbr.rel (%p19) target = $region8
    $region5: #{tpu_custom_call.1} parent=1 // loop_body
      %s23 = ssub.s32 %s18, 1
      %s24 = ssub.s32 %s18, 2
      %s25 = sadd.s32 %s18, 1
      %s26 = ssub.s32 %s18, %s25
      %p27 = scmp.eq.s32.totalorder %s26, 0
      %s29 = sadd.s32 %s28, 1
      %s30 = scalar_select %p27, %s28, %s29
      %p33 = pneg %p27
      %p34 = scmp.eq.s32.totalorder %s18, 1
      %p35 = por %p33, %p34
      %p36 = scmp.ne.s32.totalorder %s28, %s31
      %p37 = scmp.eq.s32.totalorder %s18, 0
      %p38 = por %p36, %p37
      %p39 = scmp.ne.s32.totalorder %s28, %s31
      %p40 = scmp.eq.s32.totalorder %s23, 1
      %p41 = por %p39, %p40
      %p42 = scmp.ne.s32.totalorder %s31, %s32
      %p43 = scmp.eq.s32.totalorder %s23, 0
      %p44 = por %p42, %p43
      %p45 = scmp.ne.s32.totalorder %s31, %s32
      %p46 = scmp.eq.s32.totalorder %s24, 1
      %p47 = por %p45, %p46
      %p49 = scmp.ne.s32.totalorder %s32, %s48
      %p50 = scmp.eq.s32.totalorder %s24, 0
      %p51 = por %p49, %p50
      %s52 = ssub.s32 %s18, %s25
      %p53 = scmp.eq.s32.totalorder %s52, 0
      %s55 = sadd.s32 %s54, 1
      %s56 = scalar_select %p53, %s54, %s55
      %p59 = pneg %p53
      %p60 = scmp.eq.s32.totalorder %s18, 1
      %p61 = por %p59, %p60
      %p62 = scmp.ne.s32.totalorder %s54, %s57
      %p63 = scmp.eq.s32.totalorder %s18, 0
      %p64 = por %p62, %p63
      %p65 = scmp.ne.s32.totalorder %s54, %s57
      %p66 = scmp.eq.s32.totalorder %s23, 1
      %p67 = por %p65, %p66
      %p68 = scmp.ne.s32.totalorder %s57, %s58
      %p69 = scmp.eq.s32.totalorder %s23, 0
      %p70 = por %p68, %p69
      %p71 = scmp.ne.s32.totalorder %s57, %s58
      %p72 = scmp.eq.s32.totalorder %s24, 1
      %p73 = por %p71, %p72
      %p75 = scmp.ne.s32.totalorder %s58, %s74
      %p76 = scmp.eq.s32.totalorder %s24, 0
      %p77 = por %p75, %p76
      %s79 = sadd.s32 %s78, 1
      %p82 = scmp.eq.s32.totalorder %s18, 1
      %p83 = scmp.ne.s32.totalorder %s78, %s80
      %p84 = scmp.eq.s32.totalorder %s18, 0
      %p85 = por %p83, %p84
      %p86 = scmp.ne.s32.totalorder %s78, %s80
      %p87 = scmp.eq.s32.totalorder %s23, 1
      %p88 = por %p86, %p87
      %p89 = scmp.ne.s32.totalorder %s80, %s81
      %p90 = scmp.eq.s32.totalorder %s23, 0
      %p91 = por %p89, %p90
      %p92 = scmp.ne.s32.totalorder %s80, %s81
      %p93 = scmp.eq.s32.totalorder %s24, 1
      %p94 = por %p92, %p93
      %p96 = scmp.ne.s32.totalorder %s81, %s95
      %p97 = scmp.eq.s32.totalorder %s24, 0
      %p98 = por %p96, %p97
      %s99 = ssub.s32 %s18, %s25
      %p100 = scmp.eq.s32.totalorder %s99, 0
      %s102 = sadd.s32 %s101, 1
      %s103 = scalar_select %p100, %s101, %s102
      %p106 = pneg %p100
      %p107 = scmp.eq.s32.totalorder %s18, 1
      %p108 = por %p106, %p107
      %p109 = scmp.ne.s32.totalorder %s101, %s104
      %p110 = scmp.eq.s32.totalorder %s18, 0
      %p111 = por %p109, %p110
      %p112 = scmp.ne.s32.totalorder %s101, %s104
      %p113 = scmp.eq.s32.totalorder %s23, 1
      %p114 = por %p112, %p113
      %p115 = scmp.ne.s32.totalorder %s104, %s105
      %p116 = scmp.eq.s32.totalorder %s23, 0
      %p117 = por %p115, %p116
      %p118 = scmp.ne.s32.totalorder %s104, %s105
      %p119 = scmp.eq.s32.totalorder %s24, 1
      %p120 = por %p118, %p119
      %p122 = scmp.ne.s32.totalorder %s105, %s121
      %p123 = scmp.eq.s32.totalorder %s24, 0
      %p124 = por %p122, %p123
      %p125 = scmp.le.s32.totalorder 1, %s18
      %p126 = scmp.lt.s32.totalorder %s18, 3
      %p127 = pnand %p125, %p126
      %p128 = pneg %p127
      // Predicated region
      $region9: #{tpu_custom_call.1} parent=5 // pred_check
        _
      $region10: #{tpu_custom_call.1} parent=5 // pred_check_branch
        %130 = sbr.rel (%p127) target = $region12
      $region11: #{tpu_custom_call.1} parent=5 // pred_region
        %s131 = ssub.s32 %s18, 1
        // Predicated region
        $region13: #{tpu_custom_call.1} parent=11 // pred_check
          %p132 = pneg %p91
        $region14: #{tpu_custom_call.1} parent=11 // pred_check_branch
          %134 = sbr.rel (%p132) target = $region16
        $region15: #{tpu_custom_call.1} parent=11 // pred_region
          _
        $region16: #{tpu_custom_call.1} parent=11 // pred_fallthru
          _
      $region12: #{tpu_custom_call.1} parent=5 // pred_fallthru
        _
      %p135 = scmp.lt.s32.totalorder %s18, 2
      // Predicated region
      $region17: #{tpu_custom_call.1} parent=5 // pred_check
        %p136 = pneg %p135
      $region18: #{tpu_custom_call.1} parent=5 // pred_check_branch
        %138 = sbr.rel (%p136) target = $region20
      $region19: #{tpu_custom_call.1} parent=5 // pred_region
        // Predicated region
        $region21: #{tpu_custom_call.1} parent=19 // pred_check
          %p139 = pneg %p38
        $region22: #{tpu_custom_call.1} parent=19 // pred_check_branch
          %141 = sbr.rel (%p139) target = $region24
        $region23: #{tpu_custom_call.1} parent=19 // pred_region
          %s142 = sand.u32 %s28, 1
          %s143 = scalar_lea.sflag [#allocation3], %s142
          %s144 = sand.u32 %s28, 1
          %s145 = smul.addr %s144, 8
          %s146 = scalar_lea.vmem [#allocation2], %s145
          %s148 = ssub.s32 128, 128
          %149 = vsyncadd %s143, %s148
          %s150 = smul.addr %s18, 128
          %s151 = scalar_lea.hbm %s0, %s150
          %s153 = sshll.u32 %s146, 4
          %s154 = int_to_ptr.vmem [resolvable:$true] %s153
          %156 = dma.hbm_to_vmem [thread:$0]  %s151, 128, %s154, %s143
        $region24: #{tpu_custom_call.1} parent=19 // pred_fallthru
          _
        // Predicated region
        $region25: #{tpu_custom_call.1} parent=19 // pred_check
          %p157 = pneg %p64
        $region26: #{tpu_custom_call.1} parent=19 // pred_check_branch
          %159 = sbr.rel (%p157) target = $region28
        $region27: #{tpu_custom_call.1} parent=19 // pred_region
          %s160 = sand.u32 %s54, 1
          %s161 = scalar_lea.sflag [#allocation6], %s160
          %s162 = sand.u32 %s54, 1
          %s163 = smul.addr %s162, 8
          %s164 = scalar_lea.vmem [#allocation5], %s163
          %s166 = ssub.s32 128, 128
          %167 = vsyncadd %s161, %s166
          %s168 = smul.addr %s18, 128
          %s169 = scalar_lea.hbm %s1, %s168
          %s171 = sshll.u32 %s164, 4
          %s172 = int_to_ptr.vmem [resolvable:$true] %s171
          %174 = dma.hbm_to_vmem [thread:$0]  %s169, 128, %s172, %s161
        $region28: #{tpu_custom_call.1} parent=19 // pred_fallthru
          _
      $region20: #{tpu_custom_call.1} parent=5 // pred_fallthru
        _
      %p175 = scmp.le.s32.totalorder 1, %s18
      %p176 = scmp.lt.s32.totalorder %s18, 3
      %p177 = pnand %p175, %p176
      %p178 = pneg %p177
      // Predicated region
      $region29: #{tpu_custom_call.1} parent=5 // pred_check
        _
      $region30: #{tpu_custom_call.1} parent=5 // pred_check_branch
        %180 = sbr.rel (%p177) target = $region32
      $region31: #{tpu_custom_call.1} parent=5 // pred_region
        %s181 = ssub.s32 %s18, 1
        %s182 = sand.u32 %s31, 1
        %s183 = scalar_lea.sflag [#allocation3], %s182
        %s184 = sand.u32 %s31, 1
        %s185 = smul.addr %s184, 8
        %s186 = scalar_lea.vmem [#allocation2], %s185
        // Predicated region
        $region33: #{tpu_custom_call.1} parent=31 // pred_check
          %p187 = pneg %p44
        $region34: #{tpu_custom_call.1} parent=31 // pred_check_branch
          %189 = sbr.rel (%p187) target = $region36
        $region35: #{tpu_custom_call.1} parent=31 // pred_region
          %190 = dma.done %s183, 128
        $region36: #{tpu_custom_call.1} parent=31 // pred_fallthru
          _
        %s191 = sand.u32 %s57, 1
        %s192 = scalar_lea.sflag [#allocation6], %s191
        %s193 = sand.u32 %s57, 1
        %s194 = smul.addr %s193, 8
        %s195 = scalar_lea.vmem [#allocation5], %s194
        // Predicated region
        $region37: #{tpu_custom_call.1} parent=31 // pred_check
          %p196 = pneg %p70
        $region38: #{tpu_custom_call.1} parent=31 // pred_check_branch
          %198 = sbr.rel (%p196) target = $region40
        $region39: #{tpu_custom_call.1} parent=31 // pred_region
          %199 = dma.done %s192, 128
        $region40: #{tpu_custom_call.1} parent=31 // pred_fallthru
          _
        %s200 = sand.u32 %s31, 1
        %s201 = scalar_lea.sflag [#allocation3], %s200
        %s202 = sand.u32 %s31, 1
        %s203 = smul.addr %s202, 8
        %s204 = scalar_lea.vmem [#allocation2], %s203
        %p205 = pneg %p44
        %p206 = pneg %p41
        %s207 = sand.u32 %s57, 1
        %s208 = scalar_lea.sflag [#allocation6], %s207
        %s209 = sand.u32 %s57, 1
        %s210 = smul.addr %s209, 8
        %s211 = scalar_lea.vmem [#allocation5], %s210
        %p212 = pneg %p70
        %p213 = pneg %p67
        %p214 = pneg %p91
        %p215 = pneg %p88
        %p216 = pneg %p117
        %p217 = pneg %p114
        %s218 = sand.u32 %s104, 1
        %s219 = scalar_lea.sflag [#allocation4], %s218
        %s220 = sand.u32 %s104, 1
        %s221 = smul.addr %s220, 8
        %s222 = scalar_lea.vmem [#allocation7], %s221
        %v223 = vld [vmem:[%s195] sm:$0xff]
        %224 = vadd.xlane.f32.xlu0 %v223
        %v225 = vpop.xlane.xlu0 %224
        %v226 = vrcp.pop 128.0
        %v227 = vmul.f32 %v225, %v226
        %v228 = vsub.f32 %v223, %v227
        %v229 = vmul.f32 %v228, %v228
        %230 = vadd.xlane.f32.xlu0 %v229
        %v231 = vpop.xlane.xlu0 %230
        %v232 = vmul.f32 %v231, %v226
        %v233 = vadd.f32 %v232, 1e-06
        %v234 = vrsqrt.pop %v233
        %v235 = vld [vmem:[%s2] sm:$0x1]
        %v236 = vld [vmem:[%s2 + $0x1] sm:$0x1]
        %v237 = vld [vmem:[%s186] sm:$0xff]
        %v238 = vmul.f32 %v228, %v234
        %v239 = vlaneseq
        %v240 = vshrl.u32 %v239, 7
        %v241 = vsub.s32 0, %v240
        %v242 = vrot.slane %v235, %v241
        %v243 = vmul.f32 %v238, %v242
        %v244 = vadd.f32 %v237, %v243
        %v245 = vlaneseq
        %v246 = vshrl.u32 %v245, 7
        %v247 = vsub.s32 0, %v246
        %v248 = vrot.slane %v236, %v247
        %v249 = vadd.f32 %v244, %v248
        %250 = vst [vmem:[%s222] sm:$0xff] %v249
        %s251 = sand.u32 %s104, 1
        %s252 = scalar_lea.sflag [#allocation4], %s251
        %s253 = sand.u32 %s104, 1
        %s254 = smul.addr %s253, 8
        %s255 = scalar_lea.vmem [#allocation7], %s254
        // Predicated region
        $region41: #{tpu_custom_call.1} parent=31 // pred_check
          %p256 = pneg %p114
        $region42: #{tpu_custom_call.1} parent=31 // pred_check_branch
          %258 = sbr.rel (%p256) target = $region44
        $region43: #{tpu_custom_call.1} parent=31 // pred_region
          %s260 = ssub.s32 128, 128
          %261 = vsyncadd %s252, %s260
          %s262 = smul.addr %s23, 128
          %s263 = scalar_lea.hbm %s3, %s262
          %s265 = sshll.u32 %s255, 4
          %s266 = int_to_ptr.vmem [resolvable:$true] %s265
          %268 = dma.vmem_to_hbm [thread:$0]  %s266, 128, %s263, %s252
        $region44: #{tpu_custom_call.1} parent=31 // pred_fallthru
          _
      $region32: #{tpu_custom_call.1} parent=5 // pred_fallthru
        _
      %p269 = scmp.le.s32.totalorder 2, %s18
      // Predicated region
      $region45: #{tpu_custom_call.1} parent=5 // pred_check
        %p270 = pneg %p269
      $region46: #{tpu_custom_call.1} parent=5 // pred_check_branch
        %272 = sbr.rel (%p270) target = $region48
      $region47: #{tpu_custom_call.1} parent=5 // pred_region
        %s273 = ssub.s32 %s18, 2
        // Predicated region
        $region49: #{tpu_custom_call.1} parent=47 // pred_check
          %p274 = pneg %p120
        $region50: #{tpu_custom_call.1} parent=47 // pred_check_branch
          %276 = sbr.rel (%p274) target = $region52
        $region51: #{tpu_custom_call.1} parent=47 // pred_region
          %s277 = sand.u32 %s105, 1
          %s278 = scalar_lea.sflag [#allocation4], %s277
          %s279 = sand.u32 %s105, 1
          %s280 = smul.addr %s279, 8
          %s281 = scalar_lea.vmem [#allocation7], %s280
          %282 = dma.done %s278, 128
        $region52: #{tpu_custom_call.1} parent=47 // pred_fallthru
          _
      $region48: #{tpu_custom_call.1} parent=5 // pred_fallthru
        _
    $region6: #{tpu_custom_call.1} parent=1 // loop_footer
      %s22 = sadd.s32 1, %s18
    $region7: #{tpu_custom_call.1} parent=1 // loop_footer_branch
      %17 = sbr.rel target = $region3
    $region8: #{tpu_custom_call.1} parent=1 // loop_exit
      _
    %283 = vsyncpa [#allocation3], 1
    %s284 = scalar_lea.sflag [#allocation3], 1
    %285 = vsyncpa %s284, 1
    %286 = vsyncpa [#allocation6], 1
    %s287 = scalar_lea.sflag [#allocation6], 1
    %288 = vsyncpa %s287, 1
    %289 = vsyncpa [#allocation4], 1
    %s290 = scalar_lea.sflag [#allocation4], 1
    %291 = vsyncpa %s290, 1

</llo_original>
